<compile_context>
chip_gen: v5e
topology: v5e:2x2
jax: 0.10.0
libtpu: 0.0.40
codegen_flags: <defaults>
</compile_context>

<pallas_src>
import functools

import jax
import jax.numpy as jnp
from jax.experimental import pallas as pl
from jax.experimental.pallas import tpu as pltpu


_BN_EPS = 1e-4
_VMEM_LIMIT_BYTES = 32 * 1024 * 1024     # safe scoped limit on v5e/v6e/v7x
_VMEM_TILE_BUDGET = 24 * 1024 * 1024     # keep pipelined tiles under this


def _round_up(v, m):
    return ((v + m - 1) // m) * m


# ---------------------------------------------------------------------------
# Pass 1: conv-as-matmul (MXU) + per-channel sum / sum-of-squares accumulation
# ---------------------------------------------------------------------------
def _conv_stats_kernel(p_ref, w_ref, e_ref, conv_ref, sum_ref, ssq_ref):
    # p_ref:    [TM, K_pad]        im2col patch tile (a_bit=32 -> identity)
    # w_ref:    [K_pad, C_pad]     sign(W), flattened + zero-padded
    # e_ref:    [1, 1] (SMEM)      E = mean(|W|)
    # conv_ref: [TM, C_pad]        conv output tile
    # sum_ref/ssq_ref: [1, C_pad]  running per-channel sum / sum-of-squares
    i = pl.program_id(0)

    acc = jnp.dot(p_ref[...], w_ref[...], preferred_element_type=jnp.float32)
    acc = acc * e_ref[0, 0]                     # fold DoReFa scale after the dot
    conv_ref[...] = acc

    cs = jnp.sum(acc, axis=0, keepdims=True)
    css = jnp.sum(acc * acc, axis=0, keepdims=True)

    @pl.when(i == 0)
    def _init():
        sum_ref[...] = cs
        ssq_ref[...] = css

    @pl.when(i > 0)
    def _accum():
        sum_ref[...] += cs
        ssq_ref[...] += css


# ---------------------------------------------------------------------------
# Pass 2: BatchNorm (training-mode batch stats, biased variance) + ReLU
# ---------------------------------------------------------------------------
def _bn_relu_kernel(conv_ref, sum_ref, ssq_ref, g_ref, b_ref, o_ref, *, inv_m, eps):
    mean = sum_ref[...] * inv_m
    # f32 sum/sum-of-squares; guard tiny negative from cancellation.
    var = jnp.maximum(ssq_ref[...] * inv_m - mean * mean, 0.0)
    scale = g_ref[...] * jax.lax.rsqrt(var + eps)        # rsqrt -> EUP
    shift = b_ref[...] - mean * scale
    o_ref[...] = jnp.maximum(conv_ref[...] * scale + shift, 0.0)


def dorefa_conv_bn_relu(x, weight, bias, gamma, beta, *, stride, padding,
                        use_bf16_matmul=False):
    """Forward of DorefaConvBNReLU (w_bit=1, a_bit=32, groups=1), training-mode BN.

    x: [N, Cin, H, W] NCHW float32. weight: [Cout, Cin, kh, kw]. bias/gamma/beta: [Cout].
    `bias` is accepted for interface parity but dropped: a per-channel constant bias
    cancels exactly under the batch-norm that immediately follows.
    Set use_bf16_matmul=True for bf16 MXU passes on v5e/v6e (loosen tolerances).
    """
    N, Cin, H, W = x.shape
    Cout, Cin_w, kh, kw = weight.shape
    assert Cin_w == Cin, "groups != 1 not supported"
    del bias

    sh = sw = int(stride)
    ph = pw = int(padding)
    Ho = (H + 2 * ph - kh) // sh + 1
    Wo = (W + 2 * pw - kw) // sw + 1
    M = N * Ho * Wo
    K = kh * kw * Cin

    # Lane / MXU friendly padded sizes.
    K_pad = _round_up(K, 128)
    C_pad = _round_up(Cout, 128)

    # M-tile: large enough to amortize per-step overhead, small enough that the
    # double-buffered tiles stay under the scoped-VMEM budget (v7x's 64 MiB VMEM).
    mm_bytes = 2 if use_bf16_matmul else 4
    tm = min(1024, _round_up(M, 8))

    def _tile_bytes(t):
        return (2 * t * K_pad * mm_bytes      # double-buffered patch tiles
                + K_pad * C_pad * mm_bytes    # resident sign(W)
                + 4 * t * C_pad * 4)          # conv-out tiles (pass1 out + pass2 in/out)

    while tm > 8 and _tile_bytes(tm) > _VMEM_TILE_BUDGET:
        tm = max(8, _round_up(tm // 2, 8))
    M_pad = _round_up(M, tm)
    grid_m = M_pad // tm

    # --- a_bit == 32 -> activation quantization is identity ---
    # im2col in NHWC order so the flattened [M, K] layout needs no extra transpose
    # copy (K ordering = (kh, kw, Cin), Cin contiguous on the lane axis).
    # TODO(synk): pull patch extraction fully into the kernel (halo-DMA'd x tile +
    # kh*kw shifted matmuls) to remove the remaining kh*kw im2col HBM amplification.
    x_nhwc = jnp.transpose(x, (0, 2, 3, 1)).astype(jnp.float32)
    xp = jnp.pad(x_nhwc, ((0, 0), (ph, ph), (pw, pw), (0, 0)))
    cols = []
    for i in range(kh):
        for j in range(kw):
            cols.append(
                xp[:, i:i + sh * (Ho - 1) + 1:sh, j:j + sw * (Wo - 1) + 1:sw, :])
    patches = jnp.stack(cols, axis=3)                    # [N, Ho, Wo, kh*kw, Cin]
    patches = patches.reshape(M, K)
    patches = jnp.pad(patches, ((0, M_pad - M), (0, K_pad - K)))

    # DoReFa 1-bit weight quantization, hoisted out of the per-tile hot path.
    e_scalar = jnp.mean(jnp.abs(weight)).astype(jnp.float32).reshape(1, 1)
    w_sign = jnp.sign(weight).astype(jnp.float32)                    # [Cout,Cin,kh,kw]
    w_flat = jnp.transpose(w_sign, (2, 3, 1, 0)).reshape(K, Cout)    # [(kh,kw,Cin), Cout]
    w_flat = jnp.pad(w_flat, ((0, K_pad - K), (0, C_pad - Cout)))

    mm_dtype = jnp.bfloat16 if use_bf16_matmul else jnp.float32
    patches = patches.astype(mm_dtype)
    w_flat = w_flat.astype(mm_dtype)

    g_p = jnp.pad(gamma.astype(jnp.float32).reshape(1, Cout),
                  ((0, 0), (0, C_pad - Cout)))
    b_p = jnp.pad(beta.astype(jnp.float32).reshape(1, Cout),
                  ((0, 0), (0, C_pad - Cout)))

    # ---------------- pass 1: conv + per-channel stats ----------------
    conv_out, csum, cssq = pl.pallas_call(
        _conv_stats_kernel,
        out_shape=(
            jax.ShapeDtypeStruct((M_pad, C_pad), jnp.float32),
            jax.ShapeDtypeStruct((1, C_pad), jnp.float32),
            jax.ShapeDtypeStruct((1, C_pad), jnp.float32),
        ),
        grid_spec=pltpu.PrefetchScalarGridSpec(
            num_scalar_prefetch=0,
            grid=(grid_m,),
            in_specs=[
                pl.BlockSpec((tm, K_pad), lambda i: (i, 0)),
                pl.BlockSpec((K_pad, C_pad), lambda i: (0, 0)),
                pl.BlockSpec(memory_space=pltpu.MemorySpace.SMEM),
            ],
            out_specs=[
                pl.BlockSpec((tm, C_pad), lambda i: (i, 0)),
                pl.BlockSpec((1, C_pad), lambda i: (0, 0)),
                pl.BlockSpec((1, C_pad), lambda i: (0, 0)),
            ],
        ),
        compiler_params=pltpu.CompilerParams(
            dimension_semantics=("arbitrary",),   # stats accumulate across M tiles
            vmem_limit_bytes=_VMEM_LIMIT_BYTES),
    )(patches, w_flat, e_scalar)

    # ---------------- pass 2: BN (batch stats) + ReLU ----------------
    bn_out = pl.pallas_call(
        functools.partial(_bn_relu_kernel, inv_m=1.0 / float(M), eps=_BN_EPS),
        out_shape=jax.ShapeDtypeStruct((M_pad, C_pad), jnp.float32),
        grid_spec=pltpu.PrefetchScalarGridSpec(
            num_scalar_prefetch=0,
            grid=(grid_m,),
            in_specs=[
                pl.BlockSpec((tm, C_pad), lambda i: (i, 0)),
                pl.BlockSpec((1, C_pad), lambda i: (0, 0)),
                pl.BlockSpec((1, C_pad), lambda i: (0, 0)),
                pl.BlockSpec((1, C_pad), lambda i: (0, 0)),
                pl.BlockSpec((1, C_pad), lambda i: (0, 0)),
            ],
            out_specs=pl.BlockSpec((tm, C_pad), lambda i: (i, 0)),
        ),
        compiler_params=pltpu.CompilerParams(
            dimension_semantics=("parallel",),    # megacore split on v7x
            vmem_limit_bytes=_VMEM_LIMIT_BYTES),
    )(conv_out, csum, cssq, g_p, b_p)

    # slice off padding, back to NCHW
    out = bn_out[:M, :Cout].reshape(N, Ho, Wo, Cout).transpose(0, 3, 1, 2)
    return out


def _reference(x, weight, bias, gamma, beta, *, stride, padding):
    """Pure-JAX reference matching the PyTorch forward (training-mode BN)."""
    e = jnp.mean(jnp.abs(weight))
    wq = jnp.sign(weight) * e
    out = jax.lax.conv_general_dilated(
        x, wq, window_strides=(stride, stride),
        padding=[(padding, padding), (padding, padding)],
        dimension_numbers=("NCHW", "OIHW", "NCHW"),
    )
    out = out + bias.reshape(1, -1, 1, 1)
    mean = jnp.mean(out, axis=(0, 2, 3), keepdims=True)
    var = jnp.mean((out - mean) ** 2, axis=(0, 2, 3), keepdims=True)
    xhat = (out - mean) * jax.lax.rsqrt(var + _BN_EPS)
    y = xhat * gamma.reshape(1, -1, 1, 1) + beta.reshape(1, -1, 1, 1)
    return jnp.maximum(y, 0.0)


if __name__ == "__main__":
    # Module config: in_channels=4, out_channels=8, kernel_size=3, stride=1, padding=1
    N, Cin, H, W = 2, 4, 16, 16
    Cout, kh, kw = 8, 3, 3
    stride, padding = 1, 1

    key = jax.random.PRNGKey(0)
    kx, kw_key, kb, kg, kbt = jax.random.split(key, 5)

    x = jax.random.normal(kx, (N, Cin, H, W), dtype=jnp.float32)
    # deterministic synthetic parameters (shapes from nn.Conv2d / nn.BatchNorm2d)
    fan_in = Cin * kh * kw
    bound = 1.0 / (fan_in ** 0.5)
    weight = jax.random.uniform(kw_key, (Cout, Cin, kh, kw), jnp.float32, -bound, bound)
    bias = jax.random.uniform(kb, (Cout,), jnp.float32, -bound, bound)
    gamma = jnp.ones((Cout,), jnp.float32)     # BN weight init
    beta = jnp.zeros((Cout,), jnp.float32)     # BN bias init

    fn = jax.jit(functools.partial(dorefa_conv_bn_relu, stride=stride, padding=padding))
    out = jax.block_until_ready(fn(x, weight, bias, gamma, beta))

    ref = jax.block_until_ready(
        _reference(x, weight, bias, gamma, beta, stride=stride, padding=padding))

    assert out.shape == (N, Cout, H, W), out.shape
    err = float(jnp.max(jnp.abs(out - ref)))
    assert jnp.allclose(out, ref, atol=1e-4, rtol=1e-4), err

    print("KERNEL_OK")
</pallas_src>

<mosaic_0001>
module attributes {stable_mosaic.version = 11 : i64} {
  func.func @_conv_stats_kernel(%arg0: i32, %arg1: memref<512x128xf32, #tpu.memory_space<vmem>>, %arg2: memref<128x128xf32, #tpu.memory_space<vmem>>, %arg3: memref<1x1xf32, #tpu.memory_space<smem>>, %arg4: memref<512x128xf32, #tpu.memory_space<vmem>>, %arg5: memref<1x128xf32, #tpu.memory_space<vmem>>, %arg6: memref<1x128xf32, #tpu.memory_space<vmem>>) attributes {dimension_semantics = [#tpu.dimension_semantics<arbitrary>], iteration_bounds = array<i64: 1>, scalar_prefetch = 0 : i64, scratch_operands = 0 : i64, tpu.core_type = #tpu.core_type<tc>, window_params = [{transform_indices = @transform_0, window_bounds = array<i64: 512, 128>}, {pipeline_mode = #tpu.pipeline_mode<synchronous>, transform_indices = @transform_1, window_bounds = array<i64: 128, 128>}, {transform_indices = @transform_2, window_bounds = array<i64: 1, 1>}, {transform_indices = @transform_3, window_bounds = array<i64: 512, 128>}, {pipeline_mode = #tpu.pipeline_mode<synchronous>, transform_indices = @transform_4, window_bounds = array<i64: 1, 128>}, {pipeline_mode = #tpu.pipeline_mode<synchronous>, transform_indices = @transform_5, window_bounds = array<i64: 1, 128>}]} {
    %c0 = arith.constant 0 : index
    %c0_0 = arith.constant 0 : index
    %0 = vector.load %arg1[%c0, %c0_0] : memref<512x128xf32, #tpu.memory_space<vmem>>, vector<512x128xf32>
    %c0_1 = arith.constant 0 : index
    %c0_2 = arith.constant 0 : index
    %1 = vector.load %arg2[%c0_1, %c0_2] : memref<128x128xf32, #tpu.memory_space<vmem>>, vector<128x128xf32>
    %cst = arith.constant dense<0.000000e+00> : vector<512x128xf32>
    %2 = tpu.matmul %0, %1, %cst {dimension_numbers = #tpu.dot_dimension_numbers<[1], [0], [0], [1], [0, 0, 1, 1], [], []>} : vector<512x128xf32>, vector<128x128xf32>, vector<512x128xf32> -> vector<512x128xf32>
    %c0_3 = arith.constant 0 : index
    %c0_4 = arith.constant 0 : index
    %3 = memref.load %arg3[%c0_3, %c0_4] : memref<1x1xf32, #tpu.memory_space<smem>>
    %4 = vector.broadcast %3 : f32 to vector<512x128xf32>
    %5 = arith.mulf %2, %4 : vector<512x128xf32>
    %c0_5 = arith.constant 0 : index
    %c0_6 = arith.constant 0 : index
    %6 = vector.load %arg4[%c0_5, %c0_6] : memref<512x128xf32, #tpu.memory_space<vmem>>, vector<512x128xf32>
    tpu.vector_store %arg4[%c0_5, %c0_6], %5 {strides = array<i32>} : memref<512x128xf32, #tpu.memory_space<vmem>>, vector<512x128xf32>,
    %cst_7 = arith.constant dense<0.000000e+00> : vector<128xf32>
    %7 = vector.multi_reduction <add>, %5, %cst_7 [0] : vector<512x128xf32> to vector<128xf32>
    %8 = vector.shape_cast %7 : vector<128xf32> to vector<1x128xf32>
    %9 = arith.mulf %5, %5 : vector<512x128xf32>
    %cst_8 = arith.constant dense<0.000000e+00> : vector<128xf32>
    %10 = vector.multi_reduction <add>, %9, %cst_8 [0] : vector<512x128xf32> to vector<128xf32>
    %11 = vector.shape_cast %10 : vector<128xf32> to vector<1x128xf32>
    %c0_i32 = arith.constant 0 : i32
    %12 = arith.cmpi eq, %arg0, %c0_i32 : i32
    %13 = arith.extui %12 : i1 to i32
    %c0_i32_9 = arith.constant 0 : i32
    %14 = arith.cmpi ne, %13, %c0_i32_9 : i32
    scf.if %14 {
      %c0_12 = arith.constant 0 : index
      %c0_13 = arith.constant 0 : index
      %18 = vector.load %arg5[%c0_12, %c0_13] : memref<1x128xf32, #tpu.memory_space<vmem>>, vector<1x128xf32>
      tpu.vector_store %arg5[%c0_12, %c0_13], %8 {strides = array<i32>} : memref<1x128xf32, #tpu.memory_space<vmem>>, vector<1x128xf32>,
      %c0_14 = arith.constant 0 : index
      %c0_15 = arith.constant 0 : index
      %19 = vector.load %arg6[%c0_14, %c0_15] : memref<1x128xf32, #tpu.memory_space<vmem>>, vector<1x128xf32>
      tpu.vector_store %arg6[%c0_14, %c0_15], %11 {strides = array<i32>} : memref<1x128xf32, #tpu.memory_space<vmem>>, vector<1x128xf32>,
    } else {
    }
    %c0_i32_10 = arith.constant 0 : i32
    %15 = arith.cmpi sgt, %arg0, %c0_i32_10 : i32
    %16 = arith.extui %15 : i1 to i32
    %c0_i32_11 = arith.constant 0 : i32
    %17 = arith.cmpi ne, %16, %c0_i32_11 : i32
    scf.if %17 {
      %c0_12 = arith.constant 0 : index
      %c0_13 = arith.constant 0 : index
      %18 = vector.load %arg5[%c0_12, %c0_13] : memref<1x128xf32, #tpu.memory_space<vmem>>, vector<1x128xf32>
      %19 = arith.addf %18, %8 : vector<1x128xf32>
      %c0_14 = arith.constant 0 : index
      %c0_15 = arith.constant 0 : index
      %20 = vector.load %arg5[%c0_14, %c0_15] : memref<1x128xf32, #tpu.memory_space<vmem>>, vector<1x128xf32>
      tpu.vector_store %arg5[%c0_14, %c0_15], %19 {strides = array<i32>} : memref<1x128xf32, #tpu.memory_space<vmem>>, vector<1x128xf32>,
      %c0_16 = arith.constant 0 : index
      %c0_17 = arith.constant 0 : index
      %21 = vector.load %arg6[%c0_16, %c0_17] : memref<1x128xf32, #tpu.memory_space<vmem>>, vector<1x128xf32>
      %22 = arith.addf %21, %11 : vector<1x128xf32>
      %c0_18 = arith.constant 0 : index
      %c0_19 = arith.constant 0 : index
      %23 = vector.load %arg6[%c0_18, %c0_19] : memref<1x128xf32, #tpu.memory_space<vmem>>, vector<1x128xf32>
      tpu.vector_store %arg6[%c0_18, %c0_19], %22 {strides = array<i32>} : memref<1x128xf32, #tpu.memory_space<vmem>>, vector<1x128xf32>,
    } else {
    }
    return
  }
  func.func @transform_0(%arg0: i32) -> (i32, i32) {
    %c0_i32 = arith.constant 0 : i32
    %c0_i32_0 = arith.constant 0 : i32
    return %arg0, %c0_i32 : i32, i32
  }
  func.func @transform_1(%arg0: i32) -> (i32, i32) {
    %c0_i32 = arith.constant 0 : i32
    %c0_i32_0 = arith.constant 0 : i32
    %c0_i32_1 = arith.constant 0 : i32
    return %c0_i32, %c0_i32_0 : i32, i32
  }
  func.func @transform_2(%arg0: i32) -> (i32, i32) {
    %c0_i32 = arith.constant 0 : i32
    %c0_i32_0 = arith.constant 0 : i32
    %c0_i32_1 = arith.constant 0 : i32
    return %c0_i32, %c0_i32_0 : i32, i32
  }
  func.func @transform_3(%arg0: i32) -> (i32, i32) {
    %c0_i32 = arith.constant 0 : i32
    %c0_i32_0 = arith.constant 0 : i32
    return %arg0, %c0_i32 : i32, i32
  }
  func.func @transform_4(%arg0: i32) -> (i32, i32) {
    %c0_i32 = arith.constant 0 : i32
    %c0_i32_0 = arith.constant 0 : i32
    %c0_i32_1 = arith.constant 0 : i32
    return %c0_i32, %c0_i32_0 : i32, i32
  }
  func.func @transform_5(%arg0: i32) -> (i32, i32) {
    %c0_i32 = arith.constant 0 : i32
    %c0_i32_0 = arith.constant 0 : i32
    %c0_i32_1 = arith.constant 0 : i32
    return %c0_i32, %c0_i32_0 : i32, i32
  }
}

module attributes {stable_mosaic.version = 11 : i64} {
  func.func @_bn_relu_kernel(%arg0: i32, %arg1: memref<512x128xf32, #tpu.memory_space<vmem>>, %arg2: memref<1x128xf32, #tpu.memory_space<vmem>>, %arg3: memref<1x128xf32, #tpu.memory_space<vmem>>, %arg4: memref<1x128xf32, #tpu.memory_space<vmem>>, %arg5: memref<1x128xf32, #tpu.memory_space<vmem>>, %arg6: memref<512x128xf32, #tpu.memory_space<vmem>>) attributes {dimension_semantics = [#tpu.dimension_semantics<parallel>], iteration_bounds = array<i64: 1>, scalar_prefetch = 0 : i64, scratch_operands = 0 : i64, tpu.core_type = #tpu.core_type<tc>, window_params = [{transform_indices = @transform_0, window_bounds = array<i64: 512, 128>}, {pipeline_mode = #tpu.pipeline_mode<synchronous>, transform_indices = @transform_1, window_bounds = array<i64: 1, 128>}, {pipeline_mode = #tpu.pipeline_mode<synchronous>, transform_indices = @transform_2, window_bounds = array<i64: 1, 128>}, {pipeline_mode = #tpu.pipeline_mode<synchronous>, transform_indices = @transform_3, window_bounds = array<i64: 1, 128>}, {pipeline_mode = #tpu.pipeline_mode<synchronous>, transform_indices = @transform_4, window_bounds = array<i64: 1, 128>}, {transform_indices = @transform_5, window_bounds = array<i64: 512, 128>}]} {
    %c0 = arith.constant 0 : index
    %c0_0 = arith.constant 0 : index
    %0 = vector.load %arg2[%c0, %c0_0] : memref<1x128xf32, #tpu.memory_space<vmem>>, vector<1x128xf32>
    %cst = arith.constant 0.001953125 : f32
    %1 = vector.broadcast %cst : f32 to vector<1x128xf32>
    %2 = arith.mulf %0, %1 : vector<1x128xf32>
    %c0_1 = arith.constant 0 : index
    %c0_2 = arith.constant 0 : index
    %3 = vector.load %arg3[%c0_1, %c0_2] : memref<1x128xf32, #tpu.memory_space<vmem>>, vector<1x128xf32>
    %cst_3 = arith.constant 0.001953125 : f32
    %4 = vector.broadcast %cst_3 : f32 to vector<1x128xf32>
    %5 = arith.mulf %3, %4 : vector<1x128xf32>
    %6 = arith.mulf %2, %2 : vector<1x128xf32>
    %7 = arith.subf %5, %6 : vector<1x128xf32>
    %cst_4 = arith.constant 0.000000e+00 : f32
    %8 = vector.broadcast %cst_4 : f32 to vector<1x128xf32>
    %9 = arith.maximumf %7, %8 : vector<1x128xf32>
    %c0_5 = arith.constant 0 : index
    %c0_6 = arith.constant 0 : index
    %10 = vector.load %arg4[%c0_5, %c0_6] : memref<1x128xf32, #tpu.memory_space<vmem>>, vector<1x128xf32>
    %cst_7 = arith.constant 9.99999974E-5 : f32
    %11 = vector.broadcast %cst_7 : f32 to vector<1x128xf32>
    %12 = arith.addf %9, %11 : vector<1x128xf32>
    %13 = math.rsqrt %12 : vector<1x128xf32>
    %14 = arith.mulf %10, %13 : vector<1x128xf32>
    %c0_8 = arith.constant 0 : index
    %c0_9 = arith.constant 0 : index
    %15 = vector.load %arg5[%c0_8, %c0_9] : memref<1x128xf32, #tpu.memory_space<vmem>>, vector<1x128xf32>
    %16 = arith.mulf %2, %14 : vector<1x128xf32>
    %17 = arith.subf %15, %16 : vector<1x128xf32>
    %c0_10 = arith.constant 0 : index
    %c0_11 = arith.constant 0 : index
    %18 = vector.load %arg1[%c0_10, %c0_11] : memref<512x128xf32, #tpu.memory_space<vmem>>, vector<512x128xf32>
    %19 = vector.broadcast %14 : vector<1x128xf32> to vector<512x128xf32>
    %20 = arith.mulf %18, %19 : vector<512x128xf32>
    %21 = vector.broadcast %17 : vector<1x128xf32> to vector<512x128xf32>
    %22 = arith.addf %20, %21 : vector<512x128xf32>
    %cst_12 = arith.constant 0.000000e+00 : f32
    %23 = vector.broadcast %cst_12 : f32 to vector<512x128xf32>
    %24 = arith.maximumf %22, %23 : vector<512x128xf32>
    %c0_13 = arith.constant 0 : index
    %c0_14 = arith.constant 0 : index
    %25 = vector.load %arg6[%c0_13, %c0_14] : memref<512x128xf32, #tpu.memory_space<vmem>>, vector<512x128xf32>
    tpu.vector_store %arg6[%c0_13, %c0_14], %24 {strides = array<i32>} : memref<512x128xf32, #tpu.memory_space<vmem>>, vector<512x128xf32>,
    return
  }
  func.func @transform_0(%arg0: i32) -> (i32, i32) {
    %c0_i32 = arith.constant 0 : i32
    %c0_i32_0 = arith.constant 0 : i32
    return %arg0, %c0_i32 : i32, i32
  }
  func.func @transform_1(%arg0: i32) -> (i32, i32) {
    %c0_i32 = arith.constant 0 : i32
    %c0_i32_0 = arith.constant 0 : i32
    %c0_i32_1 = arith.constant 0 : i32
    return %c0_i32, %c0_i32_0 : i32, i32
  }
  func.func @transform_2(%arg0: i32) -> (i32, i32) {
    %c0_i32 = arith.constant 0 : i32
    %c0_i32_0 = arith.constant 0 : i32
    %c0_i32_1 = arith.constant 0 : i32
    return %c0_i32, %c0_i32_0 : i32, i32
  }
  func.func @transform_3(%arg0: i32) -> (i32, i32) {
    %c0_i32 = arith.constant 0 : i32
    %c0_i32_0 = arith.constant 0 : i32
    %c0_i32_1 = arith.constant 0 : i32
    return %c0_i32, %c0_i32_0 : i32, i32
  }
  func.func @transform_4(%arg0: i32) -> (i32, i32) {
    %c0_i32 = arith.constant 0 : i32
    %c0_i32_0 = arith.constant 0 : i32
    %c0_i32_1 = arith.constant 0 : i32
    return %c0_i32, %c0_i32_0 : i32, i32
  }
  func.func @transform_5(%arg0: i32) -> (i32, i32) {
    %c0_i32 = arith.constant 0 : i32
    %c0_i32_0 = arith.constant 0 : i32
    return %arg0, %c0_i32 : i32, i32
  }
}

</mosaic_0001>

<llo_original>
// kernel: dorefa_conv_bn_relu.3
$region0: #{dorefa_conv_bn_relu.3}
  #allocation0 [shape = 'u32[]', space=smem, size = 0x4, offset = 0x4, fixed_abs, tag = 'smem constant byte address 0x4 - core index']
  #allocation1 [shape = 'u32[72,128]{1,0:T(1,128)}', space=vmem, size = 0x9000, scoped, tag = 'internal scratch']
  %s0 = inlined_call_operand.vmem [shape: f32[512,128], index: 0, kind: input, shape index: {}]
  %s1 = inlined_call_operand.vmem [shape: f32[1,128], index: 1, kind: input, shape index: {}]
  %s2 = inlined_call_operand.vmem [shape: f32[1,128], index: 2, kind: input, shape index: {}]
  %s3 = inlined_call_operand.vmem [shape: f32[1,128], index: 3, kind: input, shape index: {}]
  %s4 = inlined_call_operand.vmem [shape: f32[1,128], index: 4, kind: input, shape index: {}]
  %s5 = inlined_call_operand.vmem [shape: f32[512,128], index: 5, kind: output, shape index: {}]
  %s6 = sld [smem:[#allocation0]]
  $region30: #{dorefa_conv_bn_relu.3} parent=0
    _
  %s8 = ssub.s32 1, %s6
  %s9 = scalar_select 0, %s8, %s6
  // Predicated region
  $region2: #{dorefa_conv_bn_relu.3} parent=0 // pred_check
    _
  $region3: #{dorefa_conv_bn_relu.3} parent=0 // pred_check_branch
    %11 = sbr.rel (0) target = $region5
  $region4: #{dorefa_conv_bn_relu.3} parent=0 // pred_region
    _
  $region5: #{dorefa_conv_bn_relu.3} parent=0 // pred_fallthru
    _
  // Predicated region
  $region6: #{dorefa_conv_bn_relu.3} parent=0 // pred_check
    _
  $region7: #{dorefa_conv_bn_relu.3} parent=0 // pred_check_branch
    %13 = sbr.rel (0) target = $region9
  $region8: #{dorefa_conv_bn_relu.3} parent=0 // pred_region
    _
  $region9: #{dorefa_conv_bn_relu.3} parent=0 // pred_fallthru
    _
  // Predicated region
  $region10: #{dorefa_conv_bn_relu.3} parent=0 // pred_check
    _
  $region11: #{dorefa_conv_bn_relu.3} parent=0 // pred_check_branch
    %15 = sbr.rel (0) target = $region13
  $region12: #{dorefa_conv_bn_relu.3} parent=0 // pred_region
    _
  $region13: #{dorefa_conv_bn_relu.3} parent=0 // pred_fallthru
    _
  // Predicated region
  $region14: #{dorefa_conv_bn_relu.3} parent=0 // pred_check
    _
  $region15: #{dorefa_conv_bn_relu.3} parent=0 // pred_check_branch
    %17 = sbr.rel (0) target = $region17
  $region16: #{dorefa_conv_bn_relu.3} parent=0 // pred_region
    _
  $region17: #{dorefa_conv_bn_relu.3} parent=0 // pred_fallthru
    _
  // Predicated region
  $region18: #{dorefa_conv_bn_relu.3} parent=0 // pred_check
    _
  $region19: #{dorefa_conv_bn_relu.3} parent=0 // pred_check_branch
    %19 = sbr.rel (0) target = $region21
  $region20: #{dorefa_conv_bn_relu.3} parent=0 // pred_region
    _
  $region21: #{dorefa_conv_bn_relu.3} parent=0 // pred_fallthru
    _
  %v20 = vld [vmem:[%s1] sm:$0x1]
  %v21 = vmul.f32 %v20, 0.001953125
  %v22 = vld [vmem:[%s2] sm:$0x1]
  %v23 = vmul.f32 %v22, 0.001953125
  %v24 = vmul.f32 %v21, %v21
  %v25 = vsub.f32 %v23, %v24
  %v26 = vmax.f32 %v25, 0.0
  %v27 = vld [vmem:[%s3] sm:$0x1]
  %v28 = vadd.f32 %v26, 0.0001
  %v29 = vrsqrt.pop %v28
  %v30 = vmul.f32 %v29, %v28
  %v31 = vmul.f32 %v30, %v29
  %v32 = vmul.f32 0.5, %v31
  %v33 = vsub.f32 1.5, %v32
  %v34 = vmul.f32 %v29, %v33
  %vm35 = vweird.f32 %v28
  %vm36 = vweird.f32 %v29
  %vm37 = vmor %vm35, %vm36
  %v38 = vsel %vm37, %v29, %v34
  %v39 = vmul.f32 %v27, %v38
  %v40 = vld [vmem:[%s4] sm:$0x1]
  %v41 = vmul.f32 %v21, %v39
  %v42 = vsub.f32 %v40, %v41
  %v43 = vld [vmem:[%s0] sm:$0xff]
  %v44 = vld [vmem:[%s0 + $0x8] sm:$0xff]
  %v45 = vld [vmem:[%s0 + $0x10] sm:$0xff]
  %v46 = vld [vmem:[%s0 + $0x18] sm:$0xff]
  %v47 = vld [vmem:[%s0 + $0x20] sm:$0xff]
  %v48 = vld [vmem:[%s0 + $0x28] sm:$0xff]
  %v49 = vld [vmem:[%s0 + $0x30] sm:$0xff]
  %v50 = vld [vmem:[%s0 + $0x38] sm:$0xff]
  %v51 = vld [vmem:[%s0 + $0x40] sm:$0xff]
  %v52 = vld [vmem:[%s0 + $0x48] sm:$0xff]
  %v53 = vld [vmem:[%s0 + $0x50] sm:$0xff]
  %v54 = vld [vmem:[%s0 + $0x58] sm:$0xff]
  %v55 = vld [vmem:[%s0 + $0x60] sm:$0xff]
  %v56 = vld [vmem:[%s0 + $0x68] sm:$0xff]
  %v57 = vld [vmem:[%s0 + $0x70] sm:$0xff]
  %v58 = vld [vmem:[%s0 + $0x78] sm:$0xff]
  %v59 = vld [vmem:[%s0 + $0x80] sm:$0xff]
  %v60 = vld [vmem:[%s0 + $0x88] sm:$0xff]
  %v61 = vld [vmem:[%s0 + $0x90] sm:$0xff]
  %v62 = vld [vmem:[%s0 + $0x98] sm:$0xff]
  %v63 = vld [vmem:[%s0 + $0xa0] sm:$0xff]
  %v64 = vld [vmem:[%s0 + $0xa8] sm:$0xff]
  %v65 = vld [vmem:[%s0 + $0xb0] sm:$0xff]
  %v66 = vld [vmem:[%s0 + $0xb8] sm:$0xff]
  %v67 = vld [vmem:[%s0 + $0xc0] sm:$0xff]
  %v68 = vld [vmem:[%s0 + $0xc8] sm:$0xff]
  %v69 = vld [vmem:[%s0 + $0xd0] sm:$0xff]
  %v70 = vld [vmem:[%s0 + $0xd8] sm:$0xff]
  %v71 = vld [vmem:[%s0 + $0xe0] sm:$0xff]
  %v72 = vld [vmem:[%s0 + $0xe8] sm:$0xff]
  %v73 = vld [vmem:[%s0 + $0xf0] sm:$0xff]
  %v74 = vld [vmem:[%s0 + $0xf8] sm:$0xff]
  %v75 = vld [vmem:[%s0 + $0x100] sm:$0xff]
  %v76 = vld [vmem:[%s0 + $0x108] sm:$0xff]
  %v77 = vld [vmem:[%s0 + $0x110] sm:$0xff]
  %v78 = vld [vmem:[%s0 + $0x118] sm:$0xff]
  %v79 = vld [vmem:[%s0 + $0x120] sm:$0xff]
  %v80 = vld [vmem:[%s0 + $0x128] sm:$0xff]
  %v81 = vld [vmem:[%s0 + $0x130] sm:$0xff]
  %v82 = vld [vmem:[%s0 + $0x138] sm:$0xff]
  %v83 = vld [vmem:[%s0 + $0x140] sm:$0xff]
  %v84 = vld [vmem:[%s0 + $0x148] sm:$0xff]
  %v85 = vld [vmem:[%s0 + $0x150] sm:$0xff]
  %v86 = vld [vmem:[%s0 + $0x158] sm:$0xff]
  %v87 = vld [vmem:[%s0 + $0x160] sm:$0xff]
  %v88 = vld [vmem:[%s0 + $0x168] sm:$0xff]
  %v89 = vld [vmem:[%s0 + $0x170] sm:$0xff]
  %v90 = vld [vmem:[%s0 + $0x178] sm:$0xff]
  %v91 = vld [vmem:[%s0 + $0x180] sm:$0xff]
  %v92 = vld [vmem:[%s0 + $0x188] sm:$0xff]
  %v93 = vld [vmem:[%s0 + $0x190] sm:$0xff]
  %v94 = vld [vmem:[%s0 + $0x198] sm:$0xff]
  %v95 = vld [vmem:[%s0 + $0x1a0] sm:$0xff]
  %v96 = vld [vmem:[%s0 + $0x1a8] sm:$0xff]
  %v97 = vld [vmem:[%s0 + $0x1b0] sm:$0xff]
  %v98 = vld [vmem:[%s0 + $0x1b8] sm:$0xff]
  %v99 = vld [vmem:[%s0 + $0x1c0] sm:$0xff]
  %v100 = vld [vmem:[%s0 + $0x1c8] sm:$0xff]
  %v101 = vld [vmem:[%s0 + $0x1d0] sm:$0xff]
  %v102 = vld [vmem:[%s0 + $0x1d8] sm:$0xff]
  %v103 = vld [vmem:[%s0 + $0x1e0] sm:$0xff]
  %v104 = vld [vmem:[%s0 + $0x1e8] sm:$0xff]
  %v105 = vld [vmem:[%s0 + $0x1f0] sm:$0xff]
  %v106 = vld [vmem:[%s0 + $0x1f8] sm:$0xff]
  %v108 = vperm.slane %v39, 0
  %v110 = vmul.f32 %v43, %v108
  %v111 = vmul.f32 %v44, %v108
  %v112 = vmul.f32 %v45, %v108
  %v113 = vmul.f32 %v46, %v108
  %v114 = vmul.f32 %v47, %v108
  %v115 = vmul.f32 %v48, %v108
  %v116 = vmul.f32 %v49, %v108
  %v117 = vmul.f32 %v50, %v108
  %v118 = vmul.f32 %v51, %v108
  %v119 = vmul.f32 %v52, %v108
  %v120 = vmul.f32 %v53, %v108
  %v121 = vmul.f32 %v54, %v108
  %v122 = vmul.f32 %v55, %v108
  %v123 = vmul.f32 %v56, %v108
  %v124 = vmul.f32 %v57, %v108
  %v125 = vmul.f32 %v58, %v108
  %v126 = vmul.f32 %v59, %v108
  %v127 = vmul.f32 %v60, %v108
  %v128 = vmul.f32 %v61, %v108
  %v129 = vmul.f32 %v62, %v108
  %v130 = vmul.f32 %v63, %v108
  %v131 = vmul.f32 %v64, %v108
  %v132 = vmul.f32 %v65, %v108
  %v133 = vmul.f32 %v66, %v108
  %v134 = vmul.f32 %v67, %v108
  %v135 = vmul.f32 %v68, %v108
  %v136 = vmul.f32 %v69, %v108
  %v137 = vmul.f32 %v70, %v108
  %v138 = vmul.f32 %v71, %v108
  %v139 = vmul.f32 %v72, %v108
  %v140 = vmul.f32 %v73, %v108
  %v141 = vmul.f32 %v74, %v108
  %v142 = vmul.f32 %v75, %v108
  %v143 = vmul.f32 %v76, %v108
  %v144 = vmul.f32 %v77, %v108
  %v145 = vmul.f32 %v78, %v108
  %v146 = vmul.f32 %v79, %v108
  %v147 = vmul.f32 %v80, %v108
  %v148 = vmul.f32 %v81, %v108
  %v149 = vmul.f32 %v82, %v108
  %v150 = vmul.f32 %v83, %v108
  %v151 = vmul.f32 %v84, %v108
  %v152 = vmul.f32 %v85, %v108
  %v153 = vmul.f32 %v86, %v108
  %v154 = vmul.f32 %v87, %v108
  %v155 = vmul.f32 %v88, %v108
  %v156 = vmul.f32 %v89, %v108
  %v157 = vmul.f32 %v90, %v108
  %v158 = vmul.f32 %v91, %v108
  %v159 = vmul.f32 %v92, %v108
  %v160 = vmul.f32 %v93, %v108
  %v161 = vmul.f32 %v94, %v108
  %v162 = vmul.f32 %v95, %v108
  %v163 = vmul.f32 %v96, %v108
  %v164 = vmul.f32 %v97, %v108
  %v165 = vmul.f32 %v98, %v108
  %v166 = vmul.f32 %v99, %v108
  %v167 = vmul.f32 %v100, %v108
  %v168 = vmul.f32 %v101, %v108
  %v169 = vmul.f32 %v102, %v108
  %v170 = vmul.f32 %v103, %v108
  %v171 = vmul.f32 %v104, %v108
  %v172 = vmul.f32 %v105, %v108
  %v173 = vmul.f32 %v106, %v108
  %v175 = vperm.slane %v42, 0
  %v177 = vadd.f32 %v110, %v175
  %v178 = vadd.f32 %v111, %v175
  %v179 = vadd.f32 %v112, %v175
  %v180 = vadd.f32 %v113, %v175
  %v181 = vadd.f32 %v114, %v175
  %v182 = vadd.f32 %v115, %v175
  %v183 = vadd.f32 %v116, %v175
  %v184 = vadd.f32 %v117, %v175
  %v185 = vadd.f32 %v118, %v175
  %v186 = vadd.f32 %v119, %v175
  %v187 = vadd.f32 %v120, %v175
  %v188 = vadd.f32 %v121, %v175
  %v189 = vadd.f32 %v122, %v175
  %v190 = vadd.f32 %v123, %v175
  %v191 = vadd.f32 %v124, %v175
  %v192 = vadd.f32 %v125, %v175
  %v193 = vadd.f32 %v126, %v175
  %v194 = vadd.f32 %v127, %v175
  %v195 = vadd.f32 %v128, %v175
  %v196 = vadd.f32 %v129, %v175
  %v197 = vadd.f32 %v130, %v175
  %v198 = vadd.f32 %v131, %v175
  %v199 = vadd.f32 %v132, %v175
  %v200 = vadd.f32 %v133, %v175
  %v201 = vadd.f32 %v134, %v175
  %v202 = vadd.f32 %v135, %v175
  %v203 = vadd.f32 %v136, %v175
  %v204 = vadd.f32 %v137, %v175
  %v205 = vadd.f32 %v138, %v175
  %v206 = vadd.f32 %v139, %v175
  %v207 = vadd.f32 %v140, %v175
  %v208 = vadd.f32 %v141, %v175
  %v209 = vadd.f32 %v142, %v175
  %v210 = vadd.f32 %v143, %v175
  %v211 = vadd.f32 %v144, %v175
  %v212 = vadd.f32 %v145, %v175
  %v213 = vadd.f32 %v146, %v175
  %v214 = vadd.f32 %v147, %v175
  %v215 = vadd.f32 %v148, %v175
  %v216 = vadd.f32 %v149, %v175
  %v217 = vadd.f32 %v150, %v175
  %v218 = vadd.f32 %v151, %v175
  %v219 = vadd.f32 %v152, %v175
  %v220 = vadd.f32 %v153, %v175
  %v221 = vadd.f32 %v154, %v175
  %v222 = vadd.f32 %v155, %v175
  %v223 = vadd.f32 %v156, %v175
  %v224 = vadd.f32 %v157, %v175
  %v225 = vadd.f32 %v158, %v175
  %v226 = vadd.f32 %v159, %v175
  %v227 = vadd.f32 %v160, %v175
  %v228 = vadd.f32 %v161, %v175
  %v229 = vadd.f32 %v162, %v175
  %v230 = vadd.f32 %v163, %v175
  %v231 = vadd.f32 %v164, %v175
  %v232 = vadd.f32 %v165, %v175
  %v233 = vadd.f32 %v166, %v175
  %v234 = vadd.f32 %v167, %v175
  %v235 = vadd.f32 %v168, %v175
  %v236 = vadd.f32 %v169, %v175
  %v237 = vadd.f32 %v170, %v175
  %v238 = vadd.f32 %v171, %v175
  %v239 = vadd.f32 %v172, %v175
  %v240 = vadd.f32 %v173, %v175
  %v241 = vmax.f32 %v177, 0.0
  %v242 = vmax.f32 %v178, 0.0
  %v243 = vmax.f32 %v179, 0.0
  %v244 = vmax.f32 %v180, 0.0
  %v245 = vmax.f32 %v181, 0.0
  %v246 = vmax.f32 %v182, 0.0
  %v247 = vmax.f32 %v183, 0.0
  %v248 = vmax.f32 %v184, 0.0
  %v249 = vmax.f32 %v185, 0.0
  %v250 = vmax.f32 %v186, 0.0
  %v251 = vmax.f32 %v187, 0.0
  %v252 = vmax.f32 %v188, 0.0
  %v253 = vmax.f32 %v189, 0.0
  %v254 = vmax.f32 %v190, 0.0
  %v255 = vmax.f32 %v191, 0.0
  %v256 = vmax.f32 %v192, 0.0
  %v257 = vmax.f32 %v193, 0.0
  %v258 = vmax.f32 %v194, 0.0
  %v259 = vmax.f32 %v195, 0.0
  %v260 = vmax.f32 %v196, 0.0
  %v261 = vmax.f32 %v197, 0.0
  %v262 = vmax.f32 %v198, 0.0
  %v263 = vmax.f32 %v199, 0.0
  %v264 = vmax.f32 %v200, 0.0
  %v265 = vmax.f32 %v201, 0.0
  %v266 = vmax.f32 %v202, 0.0
  %v267 = vmax.f32 %v203, 0.0
  %v268 = vmax.f32 %v204, 0.0
  %v269 = vmax.f32 %v205, 0.0
  %v270 = vmax.f32 %v206, 0.0
  %v271 = vmax.f32 %v207, 0.0
  %v272 = vmax.f32 %v208, 0.0
  %v273 = vmax.f32 %v209, 0.0
  %v274 = vmax.f32 %v210, 0.0
  %v275 = vmax.f32 %v211, 0.0
  %v276 = vmax.f32 %v212, 0.0
  %v277 = vmax.f32 %v213, 0.0
  %v278 = vmax.f32 %v214, 0.0
  %v279 = vmax.f32 %v215, 0.0
  %v280 = vmax.f32 %v216, 0.0
  %v281 = vmax.f32 %v217, 0.0
  %v282 = vmax.f32 %v218, 0.0
  %v283 = vmax.f32 %v219, 0.0
  %v284 = vmax.f32 %v220, 0.0
  %v285 = vmax.f32 %v221, 0.0
  %v286 = vmax.f32 %v222, 0.0
  %v287 = vmax.f32 %v223, 0.0
  %v288 = vmax.f32 %v224, 0.0
  %v289 = vmax.f32 %v225, 0.0
  %v290 = vmax.f32 %v226, 0.0
  %v291 = vmax.f32 %v227, 0.0
  %v292 = vmax.f32 %v228, 0.0
  %v293 = vmax.f32 %v229, 0.0
  %v294 = vmax.f32 %v230, 0.0
  %v295 = vmax.f32 %v231, 0.0
  %v296 = vmax.f32 %v232, 0.0
  %v297 = vmax.f32 %v233, 0.0
  %v298 = vmax.f32 %v234, 0.0
  %v299 = vmax.f32 %v235, 0.0
  %v300 = vmax.f32 %v236, 0.0
  %v301 = vmax.f32 %v237, 0.0
  %v302 = vmax.f32 %v238, 0.0
  %v303 = vmax.f32 %v239, 0.0
  %v304 = vmax.f32 %v240, 0.0
  %305 = vst [vmem:[%s5] sm:$0xff] %v241
  %306 = vst [vmem:[%s5 + $0x8] sm:$0xff] %v242
  %307 = vst [vmem:[%s5 + $0x10] sm:$0xff] %v243
  %308 = vst [vmem:[%s5 + $0x18] sm:$0xff] %v244
  %309 = vst [vmem:[%s5 + $0x20] sm:$0xff] %v245
  %310 = vst [vmem:[%s5 + $0x28] sm:$0xff] %v246
  %311 = vst [vmem:[%s5 + $0x30] sm:$0xff] %v247
  %312 = vst [vmem:[%s5 + $0x38] sm:$0xff] %v248
  %313 = vst [vmem:[%s5 + $0x40] sm:$0xff] %v249
  %314 = vst [vmem:[%s5 + $0x48] sm:$0xff] %v250
  %315 = vst [vmem:[%s5 + $0x50] sm:$0xff] %v251
  %316 = vst [vmem:[%s5 + $0x58] sm:$0xff] %v252
  %317 = vst [vmem:[%s5 + $0x60] sm:$0xff] %v253
  %318 = vst [vmem:[%s5 + $0x68] sm:$0xff] %v254
  %319 = vst [vmem:[%s5 + $0x70] sm:$0xff] %v255
  %320 = vst [vmem:[%s5 + $0x78] sm:$0xff] %v256
  %321 = vst [vmem:[%s5 + $0x80] sm:$0xff] %v257
  %322 = vst [vmem:[%s5 + $0x88] sm:$0xff] %v258
  %323 = vst [vmem:[%s5 + $0x90] sm:$0xff] %v259
  %324 = vst [vmem:[%s5 + $0x98] sm:$0xff] %v260
  %325 = vst [vmem:[%s5 + $0xa0] sm:$0xff] %v261
  %326 = vst [vmem:[%s5 + $0xa8] sm:$0xff] %v262
  %327 = vst [vmem:[%s5 + $0xb0] sm:$0xff] %v263
  %328 = vst [vmem:[%s5 + $0xb8] sm:$0xff] %v264
  %329 = vst [vmem:[%s5 + $0xc0] sm:$0xff] %v265
  %330 = vst [vmem:[%s5 + $0xc8] sm:$0xff] %v266
  %331 = vst [vmem:[%s5 + $0xd0] sm:$0xff] %v267
  %332 = vst [vmem:[%s5 + $0xd8] sm:$0xff] %v268
  %333 = vst [vmem:[%s5 + $0xe0] sm:$0xff] %v269
  %334 = vst [vmem:[%s5 + $0xe8] sm:$0xff] %v270
  %335 = vst [vmem:[%s5 + $0xf0] sm:$0xff] %v271
  %336 = vst [vmem:[%s5 + $0xf8] sm:$0xff] %v272
  %337 = vst [vmem:[%s5 + $0x100] sm:$0xff] %v273
  %338 = vst [vmem:[%s5 + $0x108] sm:$0xff] %v274
  %339 = vst [vmem:[%s5 + $0x110] sm:$0xff] %v275
  %340 = vst [vmem:[%s5 + $0x118] sm:$0xff] %v276
  %341 = vst [vmem:[%s5 + $0x120] sm:$0xff] %v277
  %342 = vst [vmem:[%s5 + $0x128] sm:$0xff] %v278
  %343 = vst [vmem:[%s5 + $0x130] sm:$0xff] %v279
  %344 = vst [vmem:[%s5 + $0x138] sm:$0xff] %v280
  %345 = vst [vmem:[%s5 + $0x140] sm:$0xff] %v281
  %346 = vst [vmem:[%s5 + $0x148] sm:$0xff] %v282
  %347 = vst [vmem:[%s5 + $0x150] sm:$0xff] %v283
  %348 = vst [vmem:[%s5 + $0x158] sm:$0xff] %v284
  %349 = vst [vmem:[%s5 + $0x160] sm:$0xff] %v285
  %350 = vst [vmem:[%s5 + $0x168] sm:$0xff] %v286
  %351 = vst [vmem:[%s5 + $0x170] sm:$0xff] %v287
  %352 = vst [vmem:[%s5 + $0x178] sm:$0xff] %v288
  %353 = vst [vmem:[%s5 + $0x180] sm:$0xff] %v289
  %354 = vst [vmem:[%s5 + $0x188] sm:$0xff] %v290
  %355 = vst [vmem:[%s5 + $0x190] sm:$0xff] %v291
  %356 = vst [vmem:[%s5 + $0x198] sm:$0xff] %v292
  %357 = vst [vmem:[%s5 + $0x1a0] sm:$0xff] %v293
  %358 = vst [vmem:[%s5 + $0x1a8] sm:$0xff] %v294
  %359 = vst [vmem:[%s5 + $0x1b0] sm:$0xff] %v295
  %360 = vst [vmem:[%s5 + $0x1b8] sm:$0xff] %v296
  %361 = vst [vmem:[%s5 + $0x1c0] sm:$0xff] %v297
  %362 = vst [vmem:[%s5 + $0x1c8] sm:$0xff] %v298
  %363 = vst [vmem:[%s5 + $0x1d0] sm:$0xff] %v299
  %364 = vst [vmem:[%s5 + $0x1d8] sm:$0xff] %v300
  %365 = vst [vmem:[%s5 + $0x1e0] sm:$0xff] %v301
  %366 = vst [vmem:[%s5 + $0x1e8] sm:$0xff] %v302
  %367 = vst [vmem:[%s5 + $0x1f0] sm:$0xff] %v303
  %368 = vst [vmem:[%s5 + $0x1f8] sm:$0xff] %v304
  // Predicated region
  $region22: #{dorefa_conv_bn_relu.3} parent=0 // pred_check
    _
  $region23: #{dorefa_conv_bn_relu.3} parent=0 // pred_check_branch
    %370 = sbr.rel (0) target = $region25
  $region24: #{dorefa_conv_bn_relu.3} parent=0 // pred_region
    _
  $region25: #{dorefa_conv_bn_relu.3} parent=0 // pred_fallthru
    _
  // Predicated region
  $region26: #{dorefa_conv_bn_relu.3} parent=0 // pred_check
    _
  $region27: #{dorefa_conv_bn_relu.3} parent=0 // pred_check_branch
    %372 = sbr.rel (0) target = $region29
  $region28: #{dorefa_conv_bn_relu.3} parent=0 // pred_region
    _
  $region29: #{dorefa_conv_bn_relu.3} parent=0 // pred_fallthru
    _

// kernel: dorefa_conv_bn_relu.2
$region0: #{dorefa_conv_bn_relu.2}
  #allocation0 [shape = 'u32[]', space=smem, size = 0x4, offset = 0x4, fixed_abs, tag = 'smem constant byte address 0x4 - core index']
  #allocation1 [shape = 'u32[72,128]{1,0:T(1,128)}', space=vmem, size = 0x9000, scoped, tag = 'internal scratch']
  #allocation2 [shape = 'f32[1,1]{1,0:T(1,128)S(6)}', space=smem, size = 0x200, scoped, tag = 'scoped memory for dorefa_conv_bn_relu.2']
  %s0 = inlined_call_operand.vmem [shape: f32[512,128], index: 0, kind: input, shape index: {}]
  %s1 = inlined_call_operand.vmem [shape: f32[128,128], index: 1, kind: input, shape index: {}]
  %s2 = inlined_call_operand.<no memory space> [shape: f32[1,1], index: 2, kind: input, shape index: {}]
  %s3 = inlined_call_operand.vmem [shape: f32[512,128], index: 3, kind: output, shape index: {0}]
  %s4 = inlined_call_operand.vmem [shape: f32[1,128], index: 4, kind: output, shape index: {1}]
  %s5 = inlined_call_operand.vmem [shape: f32[1,128], index: 5, kind: output, shape index: {2}]
  %6 = xla_tuple %s3, %s4, %s5
  %s7 = sld [smem:[#allocation0]]
  $region46: #{dorefa_conv_bn_relu.2} parent=0
    _
  %s9 = ssub.s32 1, %s7
  %s10 = scalar_select 0, %s9, %s7
  %11 = sst [smem:[#allocation2]] %s2
  // Predicated region
  $region2: #{dorefa_conv_bn_relu.2} parent=0 // pred_check
    _
  $region3: #{dorefa_conv_bn_relu.2} parent=0 // pred_check_branch
    %13 = sbr.rel (0) target = $region5
  $region4: #{dorefa_conv_bn_relu.2} parent=0 // pred_region
    _
  $region5: #{dorefa_conv_bn_relu.2} parent=0 // pred_fallthru
    _
  // Predicated region
  $region6: #{dorefa_conv_bn_relu.2} parent=0 // pred_check
    _
  $region7: #{dorefa_conv_bn_relu.2} parent=0 // pred_check_branch
    %15 = sbr.rel (0) target = $region9
  $region8: #{dorefa_conv_bn_relu.2} parent=0 // pred_region
    _
  $region9: #{dorefa_conv_bn_relu.2} parent=0 // pred_fallthru
    _
  // Predicated region
  $region10: #{dorefa_conv_bn_relu.2} parent=0 // pred_check
    _
  $region11: #{dorefa_conv_bn_relu.2} parent=0 // pred_check_branch
    %17 = sbr.rel (0) target = $region13
  $region12: #{dorefa_conv_bn_relu.2} parent=0 // pred_region
    _
  $region13: #{dorefa_conv_bn_relu.2} parent=0 // pred_fallthru
    _
  %v18 = vld [vmem:[%s0] sm:$0xff]
  %v19 = vld [vmem:[%s0 + $0x8] sm:$0xff]
  %v20 = vld [vmem:[%s0 + $0x10] sm:$0xff]
  %v21 = vld [vmem:[%s0 + $0x18] sm:$0xff]
  %v22 = vld [vmem:[%s0 + $0x20] sm:$0xff]
  %v23 = vld [vmem:[%s0 + $0x28] sm:$0xff]
  %v24 = vld [vmem:[%s0 + $0x30] sm:$0xff]
  %v25 = vld [vmem:[%s0 + $0x38] sm:$0xff]
  %v26 = vld [vmem:[%s0 + $0x40] sm:$0xff]
  %v27 = vld [vmem:[%s0 + $0x48] sm:$0xff]
  %v28 = vld [vmem:[%s0 + $0x50] sm:$0xff]
  %v29 = vld [vmem:[%s0 + $0x58] sm:$0xff]
  %v30 = vld [vmem:[%s0 + $0x60] sm:$0xff]
  %v31 = vld [vmem:[%s0 + $0x68] sm:$0xff]
  %v32 = vld [vmem:[%s0 + $0x70] sm:$0xff]
  %v33 = vld [vmem:[%s0 + $0x78] sm:$0xff]
  %v34 = vld [vmem:[%s0 + $0x80] sm:$0xff]
  %v35 = vld [vmem:[%s0 + $0x88] sm:$0xff]
  %v36 = vld [vmem:[%s0 + $0x90] sm:$0xff]
  %v37 = vld [vmem:[%s0 + $0x98] sm:$0xff]
  %v38 = vld [vmem:[%s0 + $0xa0] sm:$0xff]
  %v39 = vld [vmem:[%s0 + $0xa8] sm:$0xff]
  %v40 = vld [vmem:[%s0 + $0xb0] sm:$0xff]
  %v41 = vld [vmem:[%s0 + $0xb8] sm:$0xff]
  %v42 = vld [vmem:[%s0 + $0xc0] sm:$0xff]
  %v43 = vld [vmem:[%s0 + $0xc8] sm:$0xff]
  %v44 = vld [vmem:[%s0 + $0xd0] sm:$0xff]
  %v45 = vld [vmem:[%s0 + $0xd8] sm:$0xff]
  %v46 = vld [vmem:[%s0 + $0xe0] sm:$0xff]
  %v47 = vld [vmem:[%s0 + $0xe8] sm:$0xff]
  %v48 = vld [vmem:[%s0 + $0xf0] sm:$0xff]
  %v49 = vld [vmem:[%s0 + $0xf8] sm:$0xff]
  %v50 = vld [vmem:[%s0 + $0x100] sm:$0xff]
  %v51 = vld [vmem:[%s0 + $0x108] sm:$0xff]
  %v52 = vld [vmem:[%s0 + $0x110] sm:$0xff]
  %v53 = vld [vmem:[%s0 + $0x118] sm:$0xff]
  %v54 = vld [vmem:[%s0 + $0x120] sm:$0xff]
  %v55 = vld [vmem:[%s0 + $0x128] sm:$0xff]
  %v56 = vld [vmem:[%s0 + $0x130] sm:$0xff]
  %v57 = vld [vmem:[%s0 + $0x138] sm:$0xff]
  %v58 = vld [vmem:[%s0 + $0x140] sm:$0xff]
  %v59 = vld [vmem:[%s0 + $0x148] sm:$0xff]
  %v60 = vld [vmem:[%s0 + $0x150] sm:$0xff]
  %v61 = vld [vmem:[%s0 + $0x158] sm:$0xff]
  %v62 = vld [vmem:[%s0 + $0x160] sm:$0xff]
  %v63 = vld [vmem:[%s0 + $0x168] sm:$0xff]
  %v64 = vld [vmem:[%s0 + $0x170] sm:$0xff]
  %v65 = vld [vmem:[%s0 + $0x178] sm:$0xff]
  %v66 = vld [vmem:[%s0 + $0x180] sm:$0xff]
  %v67 = vld [vmem:[%s0 + $0x188] sm:$0xff]
  %v68 = vld [vmem:[%s0 + $0x190] sm:$0xff]
  %v69 = vld [vmem:[%s0 + $0x198] sm:$0xff]
  %v70 = vld [vmem:[%s0 + $0x1a0] sm:$0xff]
  %v71 = vld [vmem:[%s0 + $0x1a8] sm:$0xff]
  %v72 = vld [vmem:[%s0 + $0x1b0] sm:$0xff]
  %v73 = vld [vmem:[%s0 + $0x1b8] sm:$0xff]
  %v74 = vld [vmem:[%s0 + $0x1c0] sm:$0xff]
  %v75 = vld [vmem:[%s0 + $0x1c8] sm:$0xff]
  %v76 = vld [vmem:[%s0 + $0x1d0] sm:$0xff]
  %v77 = vld [vmem:[%s0 + $0x1d8] sm:$0xff]
  %v78 = vld [vmem:[%s0 + $0x1e0] sm:$0xff]
  %v79 = vld [vmem:[%s0 + $0x1e8] sm:$0xff]
  %v80 = vld [vmem:[%s0 + $0x1f0] sm:$0xff]
  %v81 = vld [vmem:[%s0 + $0x1f8] sm:$0xff]
  %v82 = vld [vmem:[%s1] sm:$0xff]
  %v83 = vld [vmem:[%s1 + $0x8] sm:$0xff]
  %v84 = vld [vmem:[%s1 + $0x10] sm:$0xff]
  %v85 = vld [vmem:[%s1 + $0x18] sm:$0xff]
  %v86 = vld [vmem:[%s1 + $0x20] sm:$0xff]
  %v87 = vld [vmem:[%s1 + $0x28] sm:$0xff]
  %v88 = vld [vmem:[%s1 + $0x30] sm:$0xff]
  %v89 = vld [vmem:[%s1 + $0x38] sm:$0xff]
  %v90 = vld [vmem:[%s1 + $0x40] sm:$0xff]
  %v91 = vld [vmem:[%s1 + $0x48] sm:$0xff]
  %v92 = vld [vmem:[%s1 + $0x50] sm:$0xff]
  %v93 = vld [vmem:[%s1 + $0x58] sm:$0xff]
  %v94 = vld [vmem:[%s1 + $0x60] sm:$0xff]
  %v95 = vld [vmem:[%s1 + $0x68] sm:$0xff]
  %v96 = vld [vmem:[%s1 + $0x70] sm:$0xff]
  %v97 = vld [vmem:[%s1 + $0x78] sm:$0xff]
  %98 = vmatpush.msra.mxu0 %v97
  %99 = vmatpush.msra.mxu0 %v96
  %100 = vmatpush.msra.mxu0 %v95
  %101 = vmatpush.msra.mxu0 %v94
  %102 = vmatpush.msra.mxu0 %v93
  %103 = vmatpush.msra.mxu0 %v92
  %104 = vmatpush.msra.mxu0 %v91
  %105 = vmatpush.msra.mxu0 %v90
  %106 = vmatpush.msra.mxu0 %v89
  %107 = vmatpush.msra.mxu0 %v88
  %108 = vmatpush.msra.mxu0 %v87
  %109 = vmatpush.msra.mxu0 %v86
  %110 = vmatpush.msra.mxu0 %v85
  %111 = vmatpush.msra.mxu0 %v84
  %112 = vmatpush.msra.mxu0 %v83
  %113 = vmatpush.msra.mxu0 %v82
  %114 = vmatmul.f32.gmra.mxu0 %v18
  %v115 = vpop.f32.mrf.mxu0
  %v116 = vadd.f32 0.0, %v115
  %117 = vmatmul.f32.gmra.mxu0 %v19
  %v118 = vpop.f32.mrf.mxu0
  %v119 = vadd.f32 0.0, %v118
  %120 = vmatmul.f32.gmra.mxu0 %v20
  %v121 = vpop.f32.mrf.mxu0
  %v122 = vadd.f32 0.0, %v121
  %123 = vmatmul.f32.gmra.mxu0 %v21
  %v124 = vpop.f32.mrf.mxu0
  %v125 = vadd.f32 0.0, %v124
  %126 = vmatmul.f32.gmra.mxu0 %v22
  %v127 = vpop.f32.mrf.mxu0
  %v128 = vadd.f32 0.0, %v127
  %129 = vmatmul.f32.gmra.mxu0 %v23
  %v130 = vpop.f32.mrf.mxu0
  %v131 = vadd.f32 0.0, %v130
  %132 = vmatmul.f32.gmra.mxu0 %v24
  %v133 = vpop.f32.mrf.mxu0
  %v134 = vadd.f32 0.0, %v133
  %135 = vmatmul.f32.gmra.mxu0 %v25
  %v136 = vpop.f32.mrf.mxu0
  %v137 = vadd.f32 0.0, %v136
  %138 = vmatmul.f32.gmra.mxu0 %v26
  %v139 = vpop.f32.mrf.mxu0
  %v140 = vadd.f32 0.0, %v139
  %141 = vmatmul.f32.gmra.mxu0 %v27
  %v142 = vpop.f32.mrf.mxu0
  %v143 = vadd.f32 0.0, %v142
  %144 = vmatmul.f32.gmra.mxu0 %v28
  %v145 = vpop.f32.mrf.mxu0
  %v146 = vadd.f32 0.0, %v145
  %147 = vmatmul.f32.gmra.mxu0 %v29
  %v148 = vpop.f32.mrf.mxu0
  %v149 = vadd.f32 0.0, %v148
  %150 = vmatmul.f32.gmra.mxu0 %v30
  %v151 = vpop.f32.mrf.mxu0
  %v152 = vadd.f32 0.0, %v151
  %153 = vmatmul.f32.gmra.mxu0 %v31
  %v154 = vpop.f32.mrf.mxu0
  %v155 = vadd.f32 0.0, %v154
  %156 = vmatmul.f32.gmra.mxu0 %v32
  %v157 = vpop.f32.mrf.mxu0
  %v158 = vadd.f32 0.0, %v157
  %159 = vmatmul.f32.gmra.mxu0 %v33
  %v160 = vpop.f32.mrf.mxu0
  %v161 = vadd.f32 0.0, %v160
  %162 = vmatmul.f32.gmra.mxu0 %v34
  %v163 = vpop.f32.mrf.mxu0
  %v164 = vadd.f32 0.0, %v163
  %165 = vmatmul.f32.gmra.mxu0 %v35
  %v166 = vpop.f32.mrf.mxu0
  %v167 = vadd.f32 0.0, %v166
  %168 = vmatmul.f32.gmra.mxu0 %v36
  %v169 = vpop.f32.mrf.mxu0
  %v170 = vadd.f32 0.0, %v169
  %171 = vmatmul.f32.gmra.mxu0 %v37
  %v172 = vpop.f32.mrf.mxu0
  %v173 = vadd.f32 0.0, %v172
  %174 = vmatmul.f32.gmra.mxu0 %v38
  %v175 = vpop.f32.mrf.mxu0
  %v176 = vadd.f32 0.0, %v175
  %177 = vmatmul.f32.gmra.mxu0 %v39
  %v178 = vpop.f32.mrf.mxu0
  %v179 = vadd.f32 0.0, %v178
  %180 = vmatmul.f32.gmra.mxu0 %v40
  %v181 = vpop.f32.mrf.mxu0
  %v182 = vadd.f32 0.0, %v181
  %183 = vmatmul.f32.gmra.mxu0 %v41
  %v184 = vpop.f32.mrf.mxu0
  %v185 = vadd.f32 0.0, %v184
  %186 = vmatmul.f32.gmra.mxu0 %v42
  %v187 = vpop.f32.mrf.mxu0
  %v188 = vadd.f32 0.0, %v187
  %189 = vmatmul.f32.gmra.mxu0 %v43
  %v190 = vpop.f32.mrf.mxu0
  %v191 = vadd.f32 0.0, %v190
  %192 = vmatmul.f32.gmra.mxu0 %v44
  %v193 = vpop.f32.mrf.mxu0
  %v194 = vadd.f32 0.0, %v193
  %195 = vmatmul.f32.gmra.mxu0 %v45
  %v196 = vpop.f32.mrf.mxu0
  %v197 = vadd.f32 0.0, %v196
  %198 = vmatmul.f32.gmra.mxu0 %v46
  %v199 = vpop.f32.mrf.mxu0
  %v200 = vadd.f32 0.0, %v199
  %201 = vmatmul.f32.gmra.mxu0 %v47
  %v202 = vpop.f32.mrf.mxu0
  %v203 = vadd.f32 0.0, %v202
  %204 = vmatmul.f32.gmra.mxu0 %v48
  %v205 = vpop.f32.mrf.mxu0
  %v206 = vadd.f32 0.0, %v205
  %207 = vmatmul.f32.gmra.mxu0 %v49
  %v208 = vpop.f32.mrf.mxu0
  %v209 = vadd.f32 0.0, %v208
  %210 = vmatmul.f32.gmra.mxu0 %v50
  %v211 = vpop.f32.mrf.mxu0
  %v212 = vadd.f32 0.0, %v211
  %213 = vmatmul.f32.gmra.mxu0 %v51
  %v214 = vpop.f32.mrf.mxu0
  %v215 = vadd.f32 0.0, %v214
  %216 = vmatmul.f32.gmra.mxu0 %v52
  %v217 = vpop.f32.mrf.mxu0
  %v218 = vadd.f32 0.0, %v217
  %219 = vmatmul.f32.gmra.mxu0 %v53
  %v220 = vpop.f32.mrf.mxu0
  %v221 = vadd.f32 0.0, %v220
  %222 = vmatmul.f32.gmra.mxu0 %v54
  %v223 = vpop.f32.mrf.mxu0
  %v224 = vadd.f32 0.0, %v223
  %225 = vmatmul.f32.gmra.mxu0 %v55
  %v226 = vpop.f32.mrf.mxu0
  %v227 = vadd.f32 0.0, %v226
  %228 = vmatmul.f32.gmra.mxu0 %v56
  %v229 = vpop.f32.mrf.mxu0
  %v230 = vadd.f32 0.0, %v229
  %231 = vmatmul.f32.gmra.mxu0 %v57
  %v232 = vpop.f32.mrf.mxu0
  %v233 = vadd.f32 0.0, %v232
  %234 = vmatmul.f32.gmra.mxu0 %v58
  %v235 = vpop.f32.mrf.mxu0
  %v236 = vadd.f32 0.0, %v235
  %237 = vmatmul.f32.gmra.mxu0 %v59
  %v238 = vpop.f32.mrf.mxu0
  %v239 = vadd.f32 0.0, %v238
  %240 = vmatmul.f32.gmra.mxu0 %v60
  %v241 = vpop.f32.mrf.mxu0
  %v242 = vadd.f32 0.0, %v241
  %243 = vmatmul.f32.gmra.mxu0 %v61
  %v244 = vpop.f32.mrf.mxu0
  %v245 = vadd.f32 0.0, %v244
  %246 = vmatmul.f32.gmra.mxu0 %v62
  %v247 = vpop.f32.mrf.mxu0
  %v248 = vadd.f32 0.0, %v247
  %249 = vmatmul.f32.gmra.mxu0 %v63
  %v250 = vpop.f32.mrf.mxu0
  %v251 = vadd.f32 0.0, %v250
  %252 = vmatmul.f32.gmra.mxu0 %v64
  %v253 = vpop.f32.mrf.mxu0
  %v254 = vadd.f32 0.0, %v253
  %255 = vmatmul.f32.gmra.mxu0 %v65
  %v256 = vpop.f32.mrf.mxu0
  %v257 = vadd.f32 0.0, %v256
  %258 = vmatmul.f32.gmra.mxu0 %v66
  %v259 = vpop.f32.mrf.mxu0
  %v260 = vadd.f32 0.0, %v259
  %261 = vmatmul.f32.gmra.mxu0 %v67
  %v262 = vpop.f32.mrf.mxu0
  %v263 = vadd.f32 0.0, %v262
  %264 = vmatmul.f32.gmra.mxu0 %v68
  %v265 = vpop.f32.mrf.mxu0
  %v266 = vadd.f32 0.0, %v265
  %267 = vmatmul.f32.gmra.mxu0 %v69
  %v268 = vpop.f32.mrf.mxu0
  %v269 = vadd.f32 0.0, %v268
  %270 = vmatmul.f32.gmra.mxu0 %v70
  %v271 = vpop.f32.mrf.mxu0
  %v272 = vadd.f32 0.0, %v271
  %273 = vmatmul.f32.gmra.mxu0 %v71
  %v274 = vpop.f32.mrf.mxu0
  %v275 = vadd.f32 0.0, %v274
  %276 = vmatmul.f32.gmra.mxu0 %v72
  %v277 = vpop.f32.mrf.mxu0
  %v278 = vadd.f32 0.0, %v277
  %279 = vmatmul.f32.gmra.mxu0 %v73
  %v280 = vpop.f32.mrf.mxu0
  %v281 = vadd.f32 0.0, %v280
  %282 = vmatmul.f32.gmra.mxu0 %v74
  %v283 = vpop.f32.mrf.mxu0
  %v284 = vadd.f32 0.0, %v283
  %285 = vmatmul.f32.gmra.mxu0 %v75
  %v286 = vpop.f32.mrf.mxu0
  %v287 = vadd.f32 0.0, %v286
  %288 = vmatmul.f32.gmra.mxu0 %v76
  %v289 = vpop.f32.mrf.mxu0
  %v290 = vadd.f32 0.0, %v289
  %291 = vmatmul.f32.gmra.mxu0 %v77
  %v292 = vpop.f32.mrf.mxu0
  %v293 = vadd.f32 0.0, %v292
  %294 = vmatmul.f32.gmra.mxu0 %v78
  %v295 = vpop.f32.mrf.mxu0
  %v296 = vadd.f32 0.0, %v295
  %297 = vmatmul.f32.gmra.mxu0 %v79
  %v298 = vpop.f32.mrf.mxu0
  %v299 = vadd.f32 0.0, %v298
  %300 = vmatmul.f32.gmra.mxu0 %v80
  %v301 = vpop.f32.mrf.mxu0
  %v302 = vadd.f32 0.0, %v301
  %303 = vmatmul.f32.gmra.mxu0 %v81
  %v304 = vpop.f32.mrf.mxu0
  %v305 = vadd.f32 0.0, %v304
  %306 = vdwg.mxu0
  %s307 = sld [smem:[#allocation2]]
  %v308 = vstv %s307
  %v309 = vmul.f32 %v116, %v308
  %v310 = vmul.f32 %v119, %v308
  %v311 = vmul.f32 %v122, %v308
  %v312 = vmul.f32 %v125, %v308
  %v313 = vmul.f32 %v128, %v308
  %v314 = vmul.f32 %v131, %v308
  %v315 = vmul.f32 %v134, %v308
  %v316 = vmul.f32 %v137, %v308
  %v317 = vmul.f32 %v140, %v308
  %v318 = vmul.f32 %v143, %v308
  %v319 = vmul.f32 %v146, %v308
  %v320 = vmul.f32 %v149, %v308
  %v321 = vmul.f32 %v152, %v308
  %v322 = vmul.f32 %v155, %v308
  %v323 = vmul.f32 %v158, %v308
  %v324 = vmul.f32 %v161, %v308
  %v325 = vmul.f32 %v164, %v308
  %v326 = vmul.f32 %v167, %v308
  %v327 = vmul.f32 %v170, %v308
  %v328 = vmul.f32 %v173, %v308
  %v329 = vmul.f32 %v176, %v308
  %v330 = vmul.f32 %v179, %v308
  %v331 = vmul.f32 %v182, %v308
  %v332 = vmul.f32 %v185, %v308
  %v333 = vmul.f32 %v188, %v308
  %v334 = vmul.f32 %v191, %v308
  %v335 = vmul.f32 %v194, %v308
  %v336 = vmul.f32 %v197, %v308
  %v337 = vmul.f32 %v200, %v308
  %v338 = vmul.f32 %v203, %v308
  %v339 = vmul.f32 %v206, %v308
  %v340 = vmul.f32 %v209, %v308
  %v341 = vmul.f32 %v212, %v308
  %v342 = vmul.f32 %v215, %v308
  %v343 = vmul.f32 %v218, %v308
  %v344 = vmul.f32 %v221, %v308
  %v345 = vmul.f32 %v224, %v308
  %v346 = vmul.f32 %v227, %v308
  %v347 = vmul.f32 %v230, %v308
  %v348 = vmul.f32 %v233, %v308
  %v349 = vmul.f32 %v236, %v308
  %v350 = vmul.f32 %v239, %v308
  %v351 = vmul.f32 %v242, %v308
  %v352 = vmul.f32 %v245, %v308
  %v353 = vmul.f32 %v248, %v308
  %v354 = vmul.f32 %v251, %v308
  %v355 = vmul.f32 %v254, %v308
  %v356 = vmul.f32 %v257, %v308
  %v357 = vmul.f32 %v260, %v308
  %v358 = vmul.f32 %v263, %v308
  %v359 = vmul.f32 %v266, %v308
  %v360 = vmul.f32 %v269, %v308
  %v361 = vmul.f32 %v272, %v308
  %v362 = vmul.f32 %v275, %v308
  %v363 = vmul.f32 %v278, %v308
  %v364 = vmul.f32 %v281, %v308
  %v365 = vmul.f32 %v284, %v308
  %v366 = vmul.f32 %v287, %v308
  %v367 = vmul.f32 %v290, %v308
  %v368 = vmul.f32 %v293, %v308
  %v369 = vmul.f32 %v296, %v308
  %v370 = vmul.f32 %v299, %v308
  %v371 = vmul.f32 %v302, %v308
  %v372 = vmul.f32 %v305, %v308
  %373 = vst [vmem:[%s3] sm:$0xff] %v309
  %374 = vst [vmem:[%s3 + $0x8] sm:$0xff] %v310
  %375 = vst [vmem:[%s3 + $0x10] sm:$0xff] %v311
  %376 = vst [vmem:[%s3 + $0x18] sm:$0xff] %v312
  %377 = vst [vmem:[%s3 + $0x20] sm:$0xff] %v313
  %378 = vst [vmem:[%s3 + $0x28] sm:$0xff] %v314
  %379 = vst [vmem:[%s3 + $0x30] sm:$0xff] %v315
  %380 = vst [vmem:[%s3 + $0x38] sm:$0xff] %v316
  %381 = vst [vmem:[%s3 + $0x40] sm:$0xff] %v317
  %382 = vst [vmem:[%s3 + $0x48] sm:$0xff] %v318
  %383 = vst [vmem:[%s3 + $0x50] sm:$0xff] %v319
  %384 = vst [vmem:[%s3 + $0x58] sm:$0xff] %v320
  %385 = vst [vmem:[%s3 + $0x60] sm:$0xff] %v321
  %386 = vst [vmem:[%s3 + $0x68] sm:$0xff] %v322
  %387 = vst [vmem:[%s3 + $0x70] sm:$0xff] %v323
  %388 = vst [vmem:[%s3 + $0x78] sm:$0xff] %v324
  %389 = vst [vmem:[%s3 + $0x80] sm:$0xff] %v325
  %390 = vst [vmem:[%s3 + $0x88] sm:$0xff] %v326
  %391 = vst [vmem:[%s3 + $0x90] sm:$0xff] %v327
  %392 = vst [vmem:[%s3 + $0x98] sm:$0xff] %v328
  %393 = vst [vmem:[%s3 + $0xa0] sm:$0xff] %v329
  %394 = vst [vmem:[%s3 + $0xa8] sm:$0xff] %v330
  %395 = vst [vmem:[%s3 + $0xb0] sm:$0xff] %v331
  %396 = vst [vmem:[%s3 + $0xb8] sm:$0xff] %v332
  %397 = vst [vmem:[%s3 + $0xc0] sm:$0xff] %v333
  %398 = vst [vmem:[%s3 + $0xc8] sm:$0xff] %v334
  %399 = vst [vmem:[%s3 + $0xd0] sm:$0xff] %v335
  %400 = vst [vmem:[%s3 + $0xd8] sm:$0xff] %v336
  %401 = vst [vmem:[%s3 + $0xe0] sm:$0xff] %v337
  %402 = vst [vmem:[%s3 + $0xe8] sm:$0xff] %v338
  %403 = vst [vmem:[%s3 + $0xf0] sm:$0xff] %v339
  %404 = vst [vmem:[%s3 + $0xf8] sm:$0xff] %v340
  %405 = vst [vmem:[%s3 + $0x100] sm:$0xff] %v341
  %406 = vst [vmem:[%s3 + $0x108] sm:$0xff] %v342
  %407 = vst [vmem:[%s3 + $0x110] sm:$0xff] %v343
  %408 = vst [vmem:[%s3 + $0x118] sm:$0xff] %v344
  %409 = vst [vmem:[%s3 + $0x120] sm:$0xff] %v345
  %410 = vst [vmem:[%s3 + $0x128] sm:$0xff] %v346
  %411 = vst [vmem:[%s3 + $0x130] sm:$0xff] %v347
  %412 = vst [vmem:[%s3 + $0x138] sm:$0xff] %v348
  %413 = vst [vmem:[%s3 + $0x140] sm:$0xff] %v349
  %414 = vst [vmem:[%s3 + $0x148] sm:$0xff] %v350
  %415 = vst [vmem:[%s3 + $0x150] sm:$0xff] %v351
  %416 = vst [vmem:[%s3 + $0x158] sm:$0xff] %v352
  %417 = vst [vmem:[%s3 + $0x160] sm:$0xff] %v353
  %418 = vst [vmem:[%s3 + $0x168] sm:$0xff] %v354
  %419 = vst [vmem:[%s3 + $0x170] sm:$0xff] %v355
  %420 = vst [vmem:[%s3 + $0x178] sm:$0xff] %v356
  %421 = vst [vmem:[%s3 + $0x180] sm:$0xff] %v357
  %422 = vst [vmem:[%s3 + $0x188] sm:$0xff] %v358
  %423 = vst [vmem:[%s3 + $0x190] sm:$0xff] %v359
  %424 = vst [vmem:[%s3 + $0x198] sm:$0xff] %v360
  %425 = vst [vmem:[%s3 + $0x1a0] sm:$0xff] %v361
  %426 = vst [vmem:[%s3 + $0x1a8] sm:$0xff] %v362
  %427 = vst [vmem:[%s3 + $0x1b0] sm:$0xff] %v363
  %428 = vst [vmem:[%s3 + $0x1b8] sm:$0xff] %v364
  %429 = vst [vmem:[%s3 + $0x1c0] sm:$0xff] %v365
  %430 = vst [vmem:[%s3 + $0x1c8] sm:$0xff] %v366
  %431 = vst [vmem:[%s3 + $0x1d0] sm:$0xff] %v367
  %432 = vst [vmem:[%s3 + $0x1d8] sm:$0xff] %v368
  %433 = vst [vmem:[%s3 + $0x1e0] sm:$0xff] %v369
  %434 = vst [vmem:[%s3 + $0x1e8] sm:$0xff] %v370
  %435 = vst [vmem:[%s3 + $0x1f0] sm:$0xff] %v371
  %436 = vst [vmem:[%s3 + $0x1f8] sm:$0xff] %v372
  %v437 = vadd.f32 %v309, %v310
  %v438 = vadd.f32 %v437, %v311
  %v439 = vadd.f32 %v438, %v312
  %v440 = vadd.f32 %v439, %v313
  %v441 = vadd.f32 %v440, %v314
  %v442 = vadd.f32 %v441, %v315
  %v443 = vadd.f32 %v442, %v316
  %v444 = vadd.f32 %v443, %v317
  %v445 = vadd.f32 %v444, %v318
  %v446 = vadd.f32 %v445, %v319
  %v447 = vadd.f32 %v446, %v320
  %v448 = vadd.f32 %v447, %v321
  %v449 = vadd.f32 %v448, %v322
  %v450 = vadd.f32 %v449, %v323
  %v451 = vadd.f32 %v450, %v324
  %v452 = vadd.f32 %v451, %v325
  %v453 = vadd.f32 %v452, %v326
  %v454 = vadd.f32 %v453, %v327
  %v455 = vadd.f32 %v454, %v328
  %v456 = vadd.f32 %v455, %v329
  %v457 = vadd.f32 %v456, %v330
  %v458 = vadd.f32 %v457, %v331
  %v459 = vadd.f32 %v458, %v332
  %v460 = vadd.f32 %v459, %v333
  %v461 = vadd.f32 %v460, %v334
  %v462 = vadd.f32 %v461, %v335
  %v463 = vadd.f32 %v462, %v336
  %v464 = vadd.f32 %v463, %v337
  %v465 = vadd.f32 %v464, %v338
  %v466 = vadd.f32 %v465, %v339
  %v467 = vadd.f32 %v466, %v340
  %v468 = vadd.f32 %v467, %v341
  %v469 = vadd.f32 %v468, %v342
  %v470 = vadd.f32 %v469, %v343
  %v471 = vadd.f32 %v470, %v344
  %v472 = vadd.f32 %v471, %v345
  %v473 = vadd.f32 %v472, %v346
  %v474 = vadd.f32 %v473, %v347
  %v475 = vadd.f32 %v474, %v348
  %v476 = vadd.f32 %v475, %v349
  %v477 = vadd.f32 %v476, %v350
  %v478 = vadd.f32 %v477, %v351
  %v479 = vadd.f32 %v478, %v352
  %v480 = vadd.f32 %v479, %v353
  %v481 = vadd.f32 %v480, %v354
  %v482 = vadd.f32 %v481, %v355
  %v483 = vadd.f32 %v482, %v356
  %v484 = vadd.f32 %v483, %v357
  %v485 = vadd.f32 %v484, %v358
  %v486 = vadd.f32 %v485, %v359
  %v487 = vadd.f32 %v486, %v360
  %v488 = vadd.f32 %v487, %v361
  %v489 = vadd.f32 %v488, %v362
  %v490 = vadd.f32 %v489, %v363
  %v491 = vadd.f32 %v490, %v364
  %v492 = vadd.f32 %v491, %v365
  %v493 = vadd.f32 %v492, %v366
  %v494 = vadd.f32 %v493, %v367
  %v495 = vadd.f32 %v494, %v368
  %v496 = vadd.f32 %v495, %v369
  %v497 = vadd.f32 %v496, %v370
  %v498 = vadd.f32 %v497, %v371
  %v499 = vadd.f32 %v498, %v372
  %v500 = vrot.slane %v499, 4
  %v501 = vadd.f32 %v499, %v500
  %v502 = vrot.slane %v501, 2
  %v503 = vadd.f32 %v501, %v502
  %v504 = vrot.slane %v503, 1
  %v505 = vadd.f32 %v503, %v504
  %v506 = vmul.f32 %v309, %v309
  %v507 = vmul.f32 %v310, %v310
  %v508 = vmul.f32 %v311, %v311
  %v509 = vmul.f32 %v312, %v312
  %v510 = vmul.f32 %v313, %v313
  %v511 = vmul.f32 %v314, %v314
  %v512 = vmul.f32 %v315, %v315
  %v513 = vmul.f32 %v316, %v316
  %v514 = vmul.f32 %v317, %v317
  %v515 = vmul.f32 %v318, %v318
  %v516 = vmul.f32 %v319, %v319
  %v517 = vmul.f32 %v320, %v320
  %v518 = vmul.f32 %v321, %v321
  %v519 = vmul.f32 %v322, %v322
  %v520 = vmul.f32 %v323, %v323
  %v521 = vmul.f32 %v324, %v324
  %v522 = vmul.f32 %v325, %v325
  %v523 = vmul.f32 %v326, %v326
  %v524 = vmul.f32 %v327, %v327
  %v525 = vmul.f32 %v328, %v328
  %v526 = vmul.f32 %v329, %v329
  %v527 = vmul.f32 %v330, %v330
  %v528 = vmul.f32 %v331, %v331
  %v529 = vmul.f32 %v332, %v332
  %v530 = vmul.f32 %v333, %v333
  %v531 = vmul.f32 %v334, %v334
  %v532 = vmul.f32 %v335, %v335
  %v533 = vmul.f32 %v336, %v336
  %v534 = vmul.f32 %v337, %v337
  %v535 = vmul.f32 %v338, %v338
  %v536 = vmul.f32 %v339, %v339
  %v537 = vmul.f32 %v340, %v340
  %v538 = vmul.f32 %v341, %v341
  %v539 = vmul.f32 %v342, %v342
  %v540 = vmul.f32 %v343, %v343
  %v541 = vmul.f32 %v344, %v344
  %v542 = vmul.f32 %v345, %v345
  %v543 = vmul.f32 %v346, %v346
  %v544 = vmul.f32 %v347, %v347
  %v545 = vmul.f32 %v348, %v348
  %v546 = vmul.f32 %v349, %v349
  %v547 = vmul.f32 %v350, %v350
  %v548 = vmul.f32 %v351, %v351
  %v549 = vmul.f32 %v352, %v352
  %v550 = vmul.f32 %v353, %v353
  %v551 = vmul.f32 %v354, %v354
  %v552 = vmul.f32 %v355, %v355
  %v553 = vmul.f32 %v356, %v356
  %v554 = vmul.f32 %v357, %v357
  %v555 = vmul.f32 %v358, %v358
  %v556 = vmul.f32 %v359, %v359
  %v557 = vmul.f32 %v360, %v360
  %v558 = vmul.f32 %v361, %v361
  %v559 = vmul.f32 %v362, %v362
  %v560 = vmul.f32 %v363, %v363
  %v561 = vmul.f32 %v364, %v364
  %v562 = vmul.f32 %v365, %v365
  %v563 = vmul.f32 %v366, %v366
  %v564 = vmul.f32 %v367, %v367
  %v565 = vmul.f32 %v368, %v368
  %v566 = vmul.f32 %v369, %v369
  %v567 = vmul.f32 %v370, %v370
  %v568 = vmul.f32 %v371, %v371
  %v569 = vmul.f32 %v372, %v372
  %v570 = vadd.f32 %v506, %v507
  %v571 = vadd.f32 %v570, %v508
  %v572 = vadd.f32 %v571, %v509
  %v573 = vadd.f32 %v572, %v510
  %v574 = vadd.f32 %v573, %v511
  %v575 = vadd.f32 %v574, %v512
  %v576 = vadd.f32 %v575, %v513
  %v577 = vadd.f32 %v576, %v514
  %v578 = vadd.f32 %v577, %v515
  %v579 = vadd.f32 %v578, %v516
  %v580 = vadd.f32 %v579, %v517
  %v581 = vadd.f32 %v580, %v518
  %v582 = vadd.f32 %v581, %v519
  %v583 = vadd.f32 %v582, %v520
  %v584 = vadd.f32 %v583, %v521
  %v585 = vadd.f32 %v584, %v522
  %v586 = vadd.f32 %v585, %v523
  %v587 = vadd.f32 %v586, %v524
  %v588 = vadd.f32 %v587, %v525
  %v589 = vadd.f32 %v588, %v526
  %v590 = vadd.f32 %v589, %v527
  %v591 = vadd.f32 %v590, %v528
  %v592 = vadd.f32 %v591, %v529
  %v593 = vadd.f32 %v592, %v530
  %v594 = vadd.f32 %v593, %v531
  %v595 = vadd.f32 %v594, %v532
  %v596 = vadd.f32 %v595, %v533
  %v597 = vadd.f32 %v596, %v534
  %v598 = vadd.f32 %v597, %v535
  %v599 = vadd.f32 %v598, %v536
  %v600 = vadd.f32 %v599, %v537
  %v601 = vadd.f32 %v600, %v538
  %v602 = vadd.f32 %v601, %v539
  %v603 = vadd.f32 %v602, %v540
  %v604 = vadd.f32 %v603, %v541
  %v605 = vadd.f32 %v604, %v542
  %v606 = vadd.f32 %v605, %v543
  %v607 = vadd.f32 %v606, %v544
  %v608 = vadd.f32 %v607, %v545
  %v609 = vadd.f32 %v608, %v546
  %v610 = vadd.f32 %v609, %v547
  %v611 = vadd.f32 %v610, %v548
  %v612 = vadd.f32 %v611, %v549
  %v613 = vadd.f32 %v612, %v550
  %v614 = vadd.f32 %v613, %v551
  %v615 = vadd.f32 %v614, %v552
  %v616 = vadd.f32 %v615, %v553
  %v617 = vadd.f32 %v616, %v554
  %v618 = vadd.f32 %v617, %v555
  %v619 = vadd.f32 %v618, %v556
  %v620 = vadd.f32 %v619, %v557
  %v621 = vadd.f32 %v620, %v558
  %v622 = vadd.f32 %v621, %v559
  %v623 = vadd.f32 %v622, %v560
  %v624 = vadd.f32 %v623, %v561
  %v625 = vadd.f32 %v624, %v562
  %v626 = vadd.f32 %v625, %v563
  %v627 = vadd.f32 %v626, %v564
  %v628 = vadd.f32 %v627, %v565
  %v629 = vadd.f32 %v628, %v566
  %v630 = vadd.f32 %v629, %v567
  %v631 = vadd.f32 %v630, %v568
  %v632 = vadd.f32 %v631, %v569
  %v633 = vrot.slane %v632, 4
  %v634 = vadd.f32 %v632, %v633
  %v635 = vrot.slane %v634, 2
  %v636 = vadd.f32 %v634, %v635
  %v637 = vrot.slane %v636, 1
  %v638 = vadd.f32 %v636, %v637
  %p639 = scmp.eq.s32.totalorder 0, 0
  // Predicated region
  $region14: #{dorefa_conv_bn_relu.2} parent=0 // pred_check
    %p640 = pneg %p639
  $region15: #{dorefa_conv_bn_relu.2} parent=0 // pred_check_branch
    %642 = sbr.rel (%p640) target = $region17
  $region16: #{dorefa_conv_bn_relu.2} parent=0 // pred_region
    %643 = vst [vmem:[%s4] sm:$0x1] %v505
    %644 = vst [vmem:[%s5] sm:$0x1] %v638
  $region17: #{dorefa_conv_bn_relu.2} parent=0 // pred_fallthru
    _
  %p645 = scmp.gt.s32.totalorder 0, 0
  // Predicated region
  $region18: #{dorefa_conv_bn_relu.2} parent=0 // pred_check
    %p646 = pneg %p645
  $region19: #{dorefa_conv_bn_relu.2} parent=0 // pred_check_branch
    %648 = sbr.rel (%p646) target = $region21
  $region20: #{dorefa_conv_bn_relu.2} parent=0 // pred_region
    %v649 = vld [vmem:[%s4] sm:$0x1]
    %v650 = vadd.f32 %v649, %v505
    %651 = vst [vmem:[%s4] sm:$0x1] %v650
    %v652 = vld [vmem:[%s5] sm:$0x1]
    %v653 = vadd.f32 %v652, %v638
    %654 = vst [vmem:[%s5] sm:$0x1] %v653
  $region21: #{dorefa_conv_bn_relu.2} parent=0 // pred_fallthru
    _
  // Predicated region
  $region22: #{dorefa_conv_bn_relu.2} parent=0 // pred_check
    _
  $region23: #{dorefa_conv_bn_relu.2} parent=0 // pred_check_branch
    %656 = sbr.rel (0) target = $region25
  $region24: #{dorefa_conv_bn_relu.2} parent=0 // pred_region
    _
  $region25: #{dorefa_conv_bn_relu.2} parent=0 // pred_fallthru
    _
  // Predicated region
  $region26: #{dorefa_conv_bn_relu.2} parent=0 // pred_check
    _
  $region27: #{dorefa_conv_bn_relu.2} parent=0 // pred_check_branch
    %658 = sbr.rel (0) target = $region29
  $region28: #{dorefa_conv_bn_relu.2} parent=0 // pred_region
    _
  $region29: #{dorefa_conv_bn_relu.2} parent=0 // pred_fallthru
    _
  // Predicated region
  $region30: #{dorefa_conv_bn_relu.2} parent=0 // pred_check
    _
  $region31: #{dorefa_conv_bn_relu.2} parent=0 // pred_check_branch
    %660 = sbr.rel (0) target = $region33
  $region32: #{dorefa_conv_bn_relu.2} parent=0 // pred_region
    _
  $region33: #{dorefa_conv_bn_relu.2} parent=0 // pred_fallthru
    _
  // Predicated region
  $region34: #{dorefa_conv_bn_relu.2} parent=0 // pred_check
    _
  $region35: #{dorefa_conv_bn_relu.2} parent=0 // pred_check_branch
    %662 = sbr.rel (0) target = $region37
  $region36: #{dorefa_conv_bn_relu.2} parent=0 // pred_region
    _
  $region37: #{dorefa_conv_bn_relu.2} parent=0 // pred_fallthru
    _
  // Predicated region
  $region38: #{dorefa_conv_bn_relu.2} parent=0 // pred_check
    _
  $region39: #{dorefa_conv_bn_relu.2} parent=0 // pred_check_branch
    %664 = sbr.rel (0) target = $region41
  $region40: #{dorefa_conv_bn_relu.2} parent=0 // pred_region
    _
  $region41: #{dorefa_conv_bn_relu.2} parent=0 // pred_fallthru
    _
  // Predicated region
  $region42: #{dorefa_conv_bn_relu.2} parent=0 // pred_check
    _
  $region43: #{dorefa_conv_bn_relu.2} parent=0 // pred_check_branch
    %666 = sbr.rel (0) target = $region45
  $region44: #{dorefa_conv_bn_relu.2} parent=0 // pred_region
    _
  $region45: #{dorefa_conv_bn_relu.2} parent=0 // pred_fallthru
    _

</llo_original>
